<compile_context>
chip_gen: v7x
topology: tpu7x:2x2x1
jax: 0.10.0
libtpu: 0.0.40
codegen_flags: <defaults>
</compile_context>

<pallas_src>
import functools

import jax
import jax.numpy as jnp
from jax.experimental import pallas as pl
from jax.experimental.pallas import tpu as pltpu

F_IN = 155          # fc1 in_features (left unpadded; Mosaic masks/pads K internally)
H1 = 128
H2 = 64
OUT = 6             # fc3 out_features
OUT_PAD = 8         # output lanes padded 6 -> 8 (narrow f32 stream, masked stores)


def _cdiv(a, b):
    return (a + b - 1) // b


def _round_up(n, m):
    return _cdiv(n, m) * m


def _mlp_kernel(x_ref, w1_ref, b1_ref, w2_ref, b2_ref, w3_ref, b3_ref, o_ref):
    # f32 -> bf16 cast done here, hidden under the x-tile DMA.
    x = x_ref[...].astype(jnp.bfloat16)
    # fc1 + ReLU (bf16 operands, f32 accumulate; K=155 handled by Mosaic).
    h1 = jnp.dot(x, w1_ref[...], preferred_element_type=jnp.float32)
    h1 = jnp.maximum(h1 + b1_ref[...], 0.0)
    # dropout1: identity in eval mode
    # fc2 + ReLU
    h2 = jnp.dot(h1.astype(jnp.bfloat16), w2_ref[...],
                 preferred_element_type=jnp.float32)
    h2 = jnp.maximum(h2 + b2_ref[...], 0.0)
    # dropout2: identity in eval mode
    # fc3 (6 logits padded to 8 output lanes; the 2 extra lanes are exact zeros)
    out = jnp.dot(h2.astype(jnp.bfloat16), w3_ref[...],
                  preferred_element_type=jnp.float32) + b3_ref[...]
    o_ref[...] = out


@functools.partial(jax.jit, static_argnames=("tb",))
def music_sentiment_forward(x, params, *, tb=4096):
    """x: [B, 155] float32. params: dict of w1,b1,w2,b2,w3,b3 (w stored [in, out])."""
    B = x.shape[0]
    assert x.shape[1] == F_IN

    tb = max(8, _round_up(tb, 8))
    B_pad = _round_up(B, 8)              # pad batch only to a sublane multiple
    TB = min(tb, B_pad)
    # v7x: guarantee >= 2 grid steps whenever the batch allows it, so
    # dimension_semantics=("parallel",) gives the second TensorCore work.
    if B_pad > 8 and _cdiv(B_pad, TB) < 2:
        TB = max(8, _round_up(_cdiv(B_pad, 2), 8))
    grid = (_cdiv(B_pad, TB),)           # ragged last block is fine (row-wise model)

    if B_pad != B:
        x = jnp.pad(x, ((0, B_pad - B), (0, 0)))
    x = x.astype(jnp.float32)            # streamed as f32; cast to bf16 in-kernel

    # Tiny weight prep (once per call); weights stay VMEM-resident inside the kernel.
    w1 = params["w1"].astype(jnp.bfloat16)                                    # (155,128)
    b1 = params["b1"].astype(jnp.float32)                                     # (1,128)
    w2 = params["w2"].astype(jnp.bfloat16)                                    # (128,64)
    b2 = params["b2"].astype(jnp.float32)                                     # (1,64)
    w3 = jnp.pad(params["w3"], ((0, 0), (0, OUT_PAD - OUT))).astype(jnp.bfloat16)
    b3 = jnp.pad(params["b3"], ((0, 0), (0, OUT_PAD - OUT))).astype(jnp.float32)

    flops = 2 * B_pad * (F_IN * H1 + H1 * H2 + H2 * OUT_PAD)
    bytes_accessed = (
        B_pad * F_IN * 4                                   # x stream (f32)
        + (F_IN * H1 + H1 * H2 + H2 * OUT_PAD) * 2         # weights (bf16, once)
        + (H1 + H2 + OUT_PAD) * 4                          # biases (f32)
        + B_pad * OUT_PAD * 4                              # narrow f32 output
    )

    out = pl.pallas_call(
        _mlp_kernel,
        out_shape=jax.ShapeDtypeStruct((B_pad, OUT_PAD), jnp.float32),
        grid_spec=pltpu.PrefetchScalarGridSpec(
            num_scalar_prefetch=0,
            grid=grid,
            in_specs=[
                pl.BlockSpec((TB, F_IN), lambda i: (i, 0)),      # x tile (f32, K=155)
                pl.BlockSpec((F_IN, H1), lambda i: (0, 0)),      # w1 (VMEM-resident)
                pl.BlockSpec((1, H1), lambda i: (0, 0)),         # b1
                pl.BlockSpec((H1, H2), lambda i: (0, 0)),        # w2
                pl.BlockSpec((1, H2), lambda i: (0, 0)),         # b2
                pl.BlockSpec((H2, OUT_PAD), lambda i: (0, 0)),   # w3 (padded to 8)
                pl.BlockSpec((1, OUT_PAD), lambda i: (0, 0)),    # b3 (padded to 8)
            ],
            out_specs=pl.BlockSpec((TB, OUT_PAD), lambda i: (i, 0)),
        ),
        compiler_params=pltpu.CompilerParams(
            dimension_semantics=("parallel",),
        ),
        cost_estimate=pl.CostEstimate(
            flops=flops, transcendentals=0, bytes_accessed=bytes_accessed),
    )(x, w1, b1, w2, b2, w3, b3)

    # Cheap now: 32 B/row read. Consumers that can use the padded array directly may
    # skip this slice entirely.
    return out[:B, :OUT]


def init_params(key):
    """Deterministic init mirroring nn.Linear default (uniform +/- 1/sqrt(fan_in))."""
    def linear(k, fan_in, fan_out):
        kw, kb = jax.random.split(k)
        bound = 1.0 / jnp.sqrt(fan_in)
        w = jax.random.uniform(kw, (fan_in, fan_out), jnp.float32, -bound, bound)
        b = jax.random.uniform(kb, (1, fan_out), jnp.float32, -bound, bound)
        return w, b

    k1, k2, k3 = jax.random.split(key, 3)
    w1, b1 = linear(k1, F_IN, H1)
    w2, b2 = linear(k2, H1, H2)
    w3, b3 = linear(k3, H2, OUT)
    return {"w1": w1, "b1": b1, "w2": w2, "b2": b2, "w3": w3, "b3": b3}


def _reference_f32(x, p):
    h1 = jnp.maximum(x @ p["w1"] + p["b1"], 0.0)
    h2 = jnp.maximum(h1 @ p["w2"] + p["b2"], 0.0)
    return h2 @ p["w3"] + p["b3"]


def _reference_bf16(x, p):
    # Same operand dtypes as the kernel (bf16 matmul operands, f32 accumulate).
    bf = jnp.bfloat16
    h1 = jnp.maximum(
        jnp.dot(x.astype(bf), p["w1"].astype(bf),
                preferred_element_type=jnp.float32) + p["b1"], 0.0)
    h2 = jnp.maximum(
        jnp.dot(h1.astype(bf), p["w2"].astype(bf),
                preferred_element_type=jnp.float32) + p["b2"], 0.0)
    return jnp.dot(h2.astype(bf), p["w3"].astype(bf),
                   preferred_element_type=jnp.float32) + p["b3"]


if __name__ == "__main__":
    key = jax.random.PRNGKey(0)
    kx, kp = jax.random.split(key)

    B = 8
    x = jax.random.normal(kx, (B, F_IN), jnp.float32)
    params = init_params(kp)

    out = music_sentiment_forward(x, params)
    out = jax.block_until_ready(out)
    assert out.shape == (B, OUT), out.shape

    # Tight check vs a reference using the same bf16-operand / f32-accumulate recipe.
    ref_bf16 = _reference_bf16(x, params)
    assert jnp.allclose(out, ref_bf16, atol=2e-3, rtol=2e-3), "mismatch vs bf16-operand ref"

    # Loose check vs the full-f32 PyTorch-semantics reference (bf16 rounding only).
    ref_f32 = _reference_f32(x, params)
    assert jnp.allclose(out, ref_f32, atol=5e-2, rtol=5e-2), "mismatch vs f32 reference"

    print("KERNEL_OK")
</pallas_src>

<mosaic_0001>
module attributes {stable_mosaic.version = 11 : i64} {
  func.func @_mlp_kernel(%arg0: i32, %arg1: memref<8x155xf32, #tpu.memory_space<vmem>>, %arg2: memref<155x128xbf16, #tpu.memory_space<vmem>>, %arg3: memref<1x128xf32, #tpu.memory_space<vmem>>, %arg4: memref<128x64xbf16, #tpu.memory_space<vmem>>, %arg5: memref<1x64xf32, #tpu.memory_space<vmem>>, %arg6: memref<64x8xbf16, #tpu.memory_space<vmem>>, %arg7: memref<1x8xf32, #tpu.memory_space<vmem>>, %arg8: memref<8x8xf32, #tpu.memory_space<vmem>>) attributes {dimension_semantics = [#tpu.dimension_semantics<parallel>], iteration_bounds = array<i64: 1>, scalar_prefetch = 0 : i64, scratch_operands = 0 : i64, tpu.core_type = #tpu.core_type<tc>, window_params = [{transform_indices = @transform_0, window_bounds = array<i64: 8, 155>}, {pipeline_mode = #tpu.pipeline_mode<synchronous>, transform_indices = @transform_1, window_bounds = array<i64: 155, 128>}, {pipeline_mode = #tpu.pipeline_mode<synchronous>, transform_indices = @transform_2, window_bounds = array<i64: 1, 128>}, {pipeline_mode = #tpu.pipeline_mode<synchronous>, transform_indices = @transform_3, window_bounds = array<i64: 128, 64>}, {pipeline_mode = #tpu.pipeline_mode<synchronous>, transform_indices = @transform_4, window_bounds = array<i64: 1, 64>}, {pipeline_mode = #tpu.pipeline_mode<synchronous>, transform_indices = @transform_5, window_bounds = array<i64: 64, 8>}, {pipeline_mode = #tpu.pipeline_mode<synchronous>, transform_indices = @transform_6, window_bounds = array<i64: 1, 8>}, {transform_indices = @transform_7, window_bounds = array<i64: 8, 8>}]} {
    %c0 = arith.constant 0 : index
    %c0_0 = arith.constant 0 : index
    %0 = vector.load %arg1[%c0, %c0_0] : memref<8x155xf32, #tpu.memory_space<vmem>>, vector<8x155xf32>
    %1 = arith.truncf %0 : vector<8x155xf32> to vector<8x155xbf16>
    %c0_1 = arith.constant 0 : index
    %c0_2 = arith.constant 0 : index
    %2 = vector.load %arg2[%c0_1, %c0_2] : memref<155x128xbf16, #tpu.memory_space<vmem>>, vector<155x128xbf16>
    %cst = arith.constant dense<0.000000e+00> : vector<8x128xf32>
    %3 = tpu.matmul %1, %2, %cst {dimension_numbers = #tpu.dot_dimension_numbers<[1], [0], [0], [1], [0, 0, 1, 1], [], []>} : vector<8x155xbf16>, vector<155x128xbf16>, vector<8x128xf32> -> vector<8x128xf32>
    %c0_3 = arith.constant 0 : index
    %c0_4 = arith.constant 0 : index
    %4 = vector.load %arg3[%c0_3, %c0_4] : memref<1x128xf32, #tpu.memory_space<vmem>>, vector<1x128xf32>
    %5 = vector.broadcast %4 : vector<1x128xf32> to vector<8x128xf32>
    %6 = arith.addf %3, %5 : vector<8x128xf32>
    %cst_5 = arith.constant 0.000000e+00 : f32
    %7 = vector.broadcast %cst_5 : f32 to vector<8x128xf32>
    %8 = arith.maximumf %6, %7 : vector<8x128xf32>
    %9 = arith.truncf %8 : vector<8x128xf32> to vector<8x128xbf16>
    %c0_6 = arith.constant 0 : index
    %c0_7 = arith.constant 0 : index
    %10 = vector.load %arg4[%c0_6, %c0_7] : memref<128x64xbf16, #tpu.memory_space<vmem>>, vector<128x64xbf16>
    %cst_8 = arith.constant dense<0.000000e+00> : vector<8x64xf32>
    %11 = tpu.matmul %9, %10, %cst_8 {dimension_numbers = #tpu.dot_dimension_numbers<[1], [0], [0], [1], [0, 0, 1, 1], [], []>} : vector<8x128xbf16>, vector<128x64xbf16>, vector<8x64xf32> -> vector<8x64xf32>
    %c0_9 = arith.constant 0 : index
    %c0_10 = arith.constant 0 : index
    %12 = vector.load %arg5[%c0_9, %c0_10] : memref<1x64xf32, #tpu.memory_space<vmem>>, vector<1x64xf32>
    %13 = vector.broadcast %12 : vector<1x64xf32> to vector<8x64xf32>
    %14 = arith.addf %11, %13 : vector<8x64xf32>
    %cst_11 = arith.constant 0.000000e+00 : f32
    %15 = vector.broadcast %cst_11 : f32 to vector<8x64xf32>
    %16 = arith.maximumf %14, %15 : vector<8x64xf32>
    %17 = arith.truncf %16 : vector<8x64xf32> to vector<8x64xbf16>
    %c0_12 = arith.constant 0 : index
    %c0_13 = arith.constant 0 : index
    %18 = vector.load %arg6[%c0_12, %c0_13] : memref<64x8xbf16, #tpu.memory_space<vmem>>, vector<64x8xbf16>
    %cst_14 = arith.constant dense<0.000000e+00> : vector<8x8xf32>
    %19 = tpu.matmul %17, %18, %cst_14 {dimension_numbers = #tpu.dot_dimension_numbers<[1], [0], [0], [1], [0, 0, 1, 1], [], []>} : vector<8x64xbf16>, vector<64x8xbf16>, vector<8x8xf32> -> vector<8x8xf32>
    %c0_15 = arith.constant 0 : index
    %c0_16 = arith.constant 0 : index
    %20 = vector.load %arg7[%c0_15, %c0_16] : memref<1x8xf32, #tpu.memory_space<vmem>>, vector<1x8xf32>
    %21 = vector.broadcast %20 : vector<1x8xf32> to vector<8x8xf32>
    %22 = arith.addf %19, %21 : vector<8x8xf32>
    %c0_17 = arith.constant 0 : index
    %c0_18 = arith.constant 0 : index
    %23 = vector.load %arg8[%c0_17, %c0_18] : memref<8x8xf32, #tpu.memory_space<vmem>>, vector<8x8xf32>
    tpu.vector_store %arg8[%c0_17, %c0_18], %22 {strides = array<i32>} : memref<8x8xf32, #tpu.memory_space<vmem>>, vector<8x8xf32>,
    return
  }
  func.func @transform_0(%arg0: i32) -> (i32, i32) {
    %c0_i32 = arith.constant 0 : i32
    %c0_i32_0 = arith.constant 0 : i32
    return %arg0, %c0_i32 : i32, i32
  }
  func.func @transform_1(%arg0: i32) -> (i32, i32) {
    %c0_i32 = arith.constant 0 : i32
    %c0_i32_0 = arith.constant 0 : i32
    %c0_i32_1 = arith.constant 0 : i32
    return %c0_i32, %c0_i32_0 : i32, i32
  }
  func.func @transform_2(%arg0: i32) -> (i32, i32) {
    %c0_i32 = arith.constant 0 : i32
    %c0_i32_0 = arith.constant 0 : i32
    %c0_i32_1 = arith.constant 0 : i32
    return %c0_i32, %c0_i32_0 : i32, i32
  }
  func.func @transform_3(%arg0: i32) -> (i32, i32) {
    %c0_i32 = arith.constant 0 : i32
    %c0_i32_0 = arith.constant 0 : i32
    %c0_i32_1 = arith.constant 0 : i32
    return %c0_i32, %c0_i32_0 : i32, i32
  }
  func.func @transform_4(%arg0: i32) -> (i32, i32) {
    %c0_i32 = arith.constant 0 : i32
    %c0_i32_0 = arith.constant 0 : i32
    %c0_i32_1 = arith.constant 0 : i32
    return %c0_i32, %c0_i32_0 : i32, i32
  }
  func.func @transform_5(%arg0: i32) -> (i32, i32) {
    %c0_i32 = arith.constant 0 : i32
    %c0_i32_0 = arith.constant 0 : i32
    %c0_i32_1 = arith.constant 0 : i32
    return %c0_i32, %c0_i32_0 : i32, i32
  }
  func.func @transform_6(%arg0: i32) -> (i32, i32) {
    %c0_i32 = arith.constant 0 : i32
    %c0_i32_0 = arith.constant 0 : i32
    %c0_i32_1 = arith.constant 0 : i32
    return %c0_i32, %c0_i32_0 : i32, i32
  }
  func.func @transform_7(%arg0: i32) -> (i32, i32) {
    %c0_i32 = arith.constant 0 : i32
    %c0_i32_0 = arith.constant 0 : i32
    return %arg0, %c0_i32 : i32, i32
  }
}

</mosaic_0001>

<llo_original>
// kernel: music_sentiment_forward.1
$region0: #{music_sentiment_forward.1}
  #allocation0 [shape = 'u32[]', space=smem, size = 0x4, offset = 0x4, fixed_abs, tag = 'smem constant byte address 0x4 - core index']
  #allocation1 [shape = 'u32[144,128]{1,0:T(1,128)}', space=vmem, size = 0x12000, scoped, tag = 'internal scratch']
  %s0 = inlined_call_operand.vmem [shape: f32[8,155], index: 0, kind: input, shape index: {}]
  %s1 = inlined_call_operand.vmem [shape: bf16[155,128], index: 1, kind: input, shape index: {}]
  %s2 = inlined_call_operand.vmem [shape: f32[1,128], index: 2, kind: input, shape index: {}]
  %s3 = inlined_call_operand.vmem [shape: bf16[128,64], index: 3, kind: input, shape index: {}]
  %s4 = inlined_call_operand.vmem [shape: f32[1,64], index: 4, kind: input, shape index: {}]
  %s5 = inlined_call_operand.vmem [shape: bf16[64,8], index: 5, kind: input, shape index: {}]
  %s6 = inlined_call_operand.vmem [shape: f32[1,8], index: 6, kind: input, shape index: {}]
  %s7 = inlined_call_operand.hbm [shape: f32[8,8], index: 7, kind: output, shape index: {}]
  %s8 = sld [smem:[#allocation0]]
  $region38: #{music_sentiment_forward.1} parent=0
    _
  %s10 = ssub.s32 1, %s8
  %s11 = scalar_select 0, %s10, %s8
  $region1: #{music_sentiment_forward.1} parent=0
    #allocation2 [shape = 'u8[4096]{0}', space=vmem, size = 0x1000, scoped, tag = 'output window, operand 0, single buffered']
    #allocation3 [shape = 's32[1]{0}', space=sflag, size = 0x4, scoped, tag = 'scoped memory for music_sentiment_forward.1']
    %12 = vsyncpa [#allocation3], 0
    // Predicated region
    $region2: #{music_sentiment_forward.1} parent=1 // pred_check
      _
    $region3: #{music_sentiment_forward.1} parent=1 // pred_check_branch
      %14 = sbr.rel (0) target = $region5
    $region4: #{music_sentiment_forward.1} parent=1 // pred_region
      _
    $region5: #{music_sentiment_forward.1} parent=1 // pred_fallthru
      _
    // Predicated region
    $region6: #{music_sentiment_forward.1} parent=1 // pred_check
      _
    $region7: #{music_sentiment_forward.1} parent=1 // pred_check_branch
      %16 = sbr.rel (0) target = $region9
    $region8: #{music_sentiment_forward.1} parent=1 // pred_region
      _
    $region9: #{music_sentiment_forward.1} parent=1 // pred_fallthru
      _
    // Predicated region
    $region10: #{music_sentiment_forward.1} parent=1 // pred_check
      _
    $region11: #{music_sentiment_forward.1} parent=1 // pred_check_branch
      %18 = sbr.rel (0) target = $region13
    $region12: #{music_sentiment_forward.1} parent=1 // pred_region
      _
    $region13: #{music_sentiment_forward.1} parent=1 // pred_fallthru
      _
    // Predicated region
    $region14: #{music_sentiment_forward.1} parent=1 // pred_check
      _
    $region15: #{music_sentiment_forward.1} parent=1 // pred_check_branch
      %20 = sbr.rel (0) target = $region17
    $region16: #{music_sentiment_forward.1} parent=1 // pred_region
      _
    $region17: #{music_sentiment_forward.1} parent=1 // pred_fallthru
      _
    // Predicated region
    $region18: #{music_sentiment_forward.1} parent=1 // pred_check
      _
    $region19: #{music_sentiment_forward.1} parent=1 // pred_check_branch
      %22 = sbr.rel (0) target = $region21
    $region20: #{music_sentiment_forward.1} parent=1 // pred_region
      _
    $region21: #{music_sentiment_forward.1} parent=1 // pred_fallthru
      _
    // Predicated region
    $region22: #{music_sentiment_forward.1} parent=1 // pred_check
      _
    $region23: #{music_sentiment_forward.1} parent=1 // pred_check_branch
      %24 = sbr.rel (0) target = $region25
    $region24: #{music_sentiment_forward.1} parent=1 // pred_region
      _
    $region25: #{music_sentiment_forward.1} parent=1 // pred_fallthru
      _
    // Predicated region
    $region26: #{music_sentiment_forward.1} parent=1 // pred_check
      _
    $region27: #{music_sentiment_forward.1} parent=1 // pred_check_branch
      %26 = sbr.rel (0) target = $region29
    $region28: #{music_sentiment_forward.1} parent=1 // pred_region
      _
    $region29: #{music_sentiment_forward.1} parent=1 // pred_fallthru
      _
    %v28 = vld [vmem:[%s0] sm:$0xff]
    %v29 = vld [vmem:[%s0 + $0x8] sm:$0xff]
    %v30 = vpack.c.bf16 %v28, %v28
    %v31 = vpack.c.bf16 %v29, %v29
    %v32 = vld [vmem:[%s1] sm:$0xf]
    %v33 = vld [vmem:[%s1 + $0x4] sm:$0xf]
    %v34 = vld [vmem:[%s1 + $0x8] sm:$0xf]
    %v35 = vld [vmem:[%s1 + $0xc] sm:$0xf]
    %v36 = vld [vmem:[%s1 + $0x10] sm:$0xf]
    %v37 = vld [vmem:[%s1 + $0x14] sm:$0xf]
    %v38 = vld [vmem:[%s1 + $0x18] sm:$0xf]
    %v39 = vld [vmem:[%s1 + $0x1c] sm:$0xf]
    %v40 = vld [vmem:[%s1 + $0x20] sm:$0xf]
    %v41 = vld [vmem:[%s1 + $0x24] sm:$0xf]
    %v42 = vld [vmem:[%s1 + $0x28] sm:$0xf]
    %v43 = vld [vmem:[%s1 + $0x2c] sm:$0xf]
    %v44 = vld [vmem:[%s1 + $0x30] sm:$0xf]
    %v45 = vld [vmem:[%s1 + $0x34] sm:$0xf]
    %v46 = vld [vmem:[%s1 + $0x38] sm:$0xf]
    %v47 = vld [vmem:[%s1 + $0x3c] sm:$0xf]
    %v48 = vld [vmem:[%s1 + $0x40] sm:$0xf]
    %v49 = vld [vmem:[%s1 + $0x44] sm:$0xf]
    %v50 = vld [vmem:[%s1 + $0x48] sm:$0xf]
    %v51 = vld [vmem:[%s1 + $0x4c] sm:$0x3]
    %v52 = vld [vmem:[%s2] sm:$0x1]
    %v54 = vlaneseq
    %v55 = vshrl.u32 %v54, 7
    %v56 = vsub.s32 0, %v55
    %v57 = vrot.slane %v52, %v56
    %v79 = vunpack.c.l.b16 %v32
    %v80 = vunpack.c.l.b16 %v33
    %v81 = vunpack.c.l.b16 %v34
    %v82 = vunpack.c.l.b16 %v35
    %v83 = vunpack.c.l.b16 %v36
    %v84 = vunpack.c.l.b16 %v37
    %v85 = vunpack.c.l.b16 %v38
    %v86 = vunpack.c.l.b16 %v39
    %v87 = vunpack.c.l.b16 %v40
    %v88 = vunpack.c.l.b16 %v41
    %v89 = vunpack.c.l.b16 %v42
    %v90 = vunpack.c.l.b16 %v43
    %v91 = vunpack.c.l.b16 %v44
    %v92 = vunpack.c.l.b16 %v45
    %v93 = vunpack.c.l.b16 %v46
    %v94 = vunpack.c.l.b16 %v47
    %v95 = vunpack.c.l.b16 %v48
    %v96 = vunpack.c.l.b16 %v49
    %v97 = vunpack.c.l.b16 %v50
    %v98 = vunpack.c.l.b16 %v51
    %v99 = vpack.c.b16 %v80, %v79
    %v100 = vpack.c.b16 %v82, %v81
    %v101 = vpack.c.b16 %v84, %v83
    %v102 = vpack.c.b16 %v86, %v85
    %v103 = vpack.c.b16 %v88, %v87
    %v104 = vpack.c.b16 %v90, %v89
    %v105 = vpack.c.b16 %v92, %v91
    %v106 = vpack.c.b16 %v94, %v93
    %v107 = vpack.c.b16 %v96, %v95
    %v108 = vpack.c.b16 %v98, %v97
    %vm118 = vcmask 220160
    %v120 = vsel %vm118, %v31, 0
    %vm122 = vcmask 1044480
    %vm123 = vcmask 1045504
    %v124 = vsel %vm122, 4294967295, 65535
    %v125 = vsel %vm123, %v124, 0
    %v127 = vand.u32 %v108, %v125
    %129 = vmatprep.subr.bf16.mxu0 0
    %130 = vmatpush1.bf16.msra.mxu0 %v99
    %131 = vmatprep.subr.bf16.mxu0 0
    %132 = vmatpush1.bf16.msra.mxu0 %v100
    %133 = vmatprep.subr.bf16.mxu0 0
    %134 = vmatpush1.bf16.msra.mxu0 %v101
    %135 = vmatprep.subr.bf16.mxu0 0
    %136 = vmatpush1.bf16.msra.mxu0 %v102
    %137 = vmatprep.subr.bf16.mxu0 0
    %138 = vmatpush1.bf16.msra.mxu0 %v103
    %139 = vmatprep.subr.bf16.mxu0 0
    %140 = vmatpush1.bf16.msra.mxu0 %v104
    %141 = vmatprep.subr.bf16.mxu0 0
    %142 = vmatpush1.bf16.msra.mxu0 %v105
    %143 = vmatprep.subr.bf16.mxu0 0
    %144 = vmatpush1.bf16.msra.mxu0 %v106
    %145 = vmatprep.subr.bf16.mxu0 0
    %146 = vmatpush1.bf16.msra.mxu0 %v107
    %147 = vmatprep.subr.bf16.mxu0 0
    %148 = vmatpush1.bf16.msra.mxu0 %v127
    %149 = vmatprep.subr.bf16.mxu0 0
    %150 = vmatpush1.bf16.msra.mxu0 0
    %151 = vmatprep.subr.bf16.mxu0 0
    %152 = vmatpush1.bf16.msra.mxu0 0
    %153 = vmatprep.subr.bf16.mxu0 0
    %154 = vmatpush1.bf16.msra.mxu0 0
    %155 = vmatprep.subr.bf16.mxu0 0
    %156 = vmatpush1.bf16.msra.mxu0 0
    %157 = vmatprep.subr.bf16.mxu0 0
    %158 = vmatpush1.bf16.msra.mxu0 0
    %159 = vmatprep.subr.bf16.mxu0 0
    %160 = vmatpush1.bf16.msra.mxu0 0
    %161 = vmatprep.mubr.bf16.mxu0 %v120
    %162 = vmatmul.mubr.bf16.gmra.mrb[0].mxu0 %v30
    %v163 = vpop.f32.mrb[0].mxu0
    %v164 = vadd.f32 %v57, %v163
    %v165 = vpop.f32.mrb[0].mxu0
    %v166 = vpop.f32.mrb[0].mxu0
    %v167 = vpop.f32.mrb[0].mxu0
    %168 = vdwg.mxu0
    %v169 = vmax.f32 %v164, 0.0
    %v170 = vpack.c.bf16 %v169, %v169
    %v171 = vld [vmem:[%s3] sm:$0xf]
    %v172 = vld [vmem:[%s3 + $0x4] sm:$0xf]
    %v173 = vld [vmem:[%s3 + $0x8] sm:$0xf]
    %v174 = vld [vmem:[%s3 + $0xc] sm:$0xf]
    %v175 = vld [vmem:[%s3 + $0x10] sm:$0xf]
    %v176 = vld [vmem:[%s3 + $0x14] sm:$0xf]
    %v177 = vld [vmem:[%s3 + $0x18] sm:$0xf]
    %v178 = vld [vmem:[%s3 + $0x1c] sm:$0xf]
    %v179 = vld [vmem:[%s3 + $0x20] sm:$0xf]
    %v180 = vld [vmem:[%s3 + $0x24] sm:$0xf]
    %v181 = vld [vmem:[%s3 + $0x28] sm:$0xf]
    %v182 = vld [vmem:[%s3 + $0x2c] sm:$0xf]
    %v183 = vld [vmem:[%s3 + $0x30] sm:$0xf]
    %v184 = vld [vmem:[%s3 + $0x34] sm:$0xf]
    %v185 = vld [vmem:[%s3 + $0x38] sm:$0xf]
    %v186 = vld [vmem:[%s3 + $0x3c] sm:$0xf]
    %v187 = vld [vmem:[%s4] sm:$0x1]
    %v189 = vlaneseq
    %v190 = vshrl.u32 %v189, 7
    %v191 = vsub.s32 0, %v190
    %v192 = vrot.slane %v187, %v191
    %v210 = vunpack.c.l.b16 %v171
    %v211 = vunpack.c.l.b16 %v172
    %v212 = vunpack.c.l.b16 %v173
    %v213 = vunpack.c.l.b16 %v174
    %v214 = vunpack.c.l.b16 %v175
    %v215 = vunpack.c.l.b16 %v176
    %v216 = vunpack.c.l.b16 %v177
    %v217 = vunpack.c.l.b16 %v178
    %v218 = vunpack.c.l.b16 %v179
    %v219 = vunpack.c.l.b16 %v180
    %v220 = vunpack.c.l.b16 %v181
    %v221 = vunpack.c.l.b16 %v182
    %v222 = vunpack.c.l.b16 %v183
    %v223 = vunpack.c.l.b16 %v184
    %v224 = vunpack.c.l.b16 %v185
    %v225 = vunpack.c.l.b16 %v186
    %v226 = vpack.c.b16 %v211, %v210
    %v227 = vpack.c.b16 %v213, %v212
    %v228 = vpack.c.b16 %v215, %v214
    %v229 = vpack.c.b16 %v217, %v216
    %v230 = vpack.c.b16 %v219, %v218
    %v231 = vpack.c.b16 %v221, %v220
    %v232 = vpack.c.b16 %v223, %v222
    %v233 = vpack.c.b16 %v225, %v224
    %242 = vmatprep.subr.bf16.mxu0 0
    %243 = vmatpush1.bf16.msra.mxu0 %v226
    %244 = vmatprep.subr.bf16.mxu0 0
    %245 = vmatpush1.bf16.msra.mxu0 %v227
    %246 = vmatprep.subr.bf16.mxu0 0
    %247 = vmatpush1.bf16.msra.mxu0 %v228
    %248 = vmatprep.subr.bf16.mxu0 0
    %249 = vmatpush1.bf16.msra.mxu0 %v229
    %250 = vmatprep.subr.bf16.mxu0 0
    %251 = vmatpush1.bf16.msra.mxu0 %v230
    %252 = vmatprep.subr.bf16.mxu0 0
    %253 = vmatpush1.bf16.msra.mxu0 %v231
    %254 = vmatprep.subr.bf16.mxu0 0
    %255 = vmatpush1.bf16.msra.mxu0 %v232
    %256 = vmatprep.subr.bf16.mxu0 0
    %257 = vmatpush1.bf16.msra.mxu0 %v233
    %258 = vmatprep.subr.bf16.mxu0 0
    %259 = vmatpush1.bf16.msra.mxu0 0
    %260 = vmatprep.subr.bf16.mxu0 0
    %261 = vmatpush1.bf16.msra.mxu0 0
    %262 = vmatprep.subr.bf16.mxu0 0
    %263 = vmatpush1.bf16.msra.mxu0 0
    %264 = vmatprep.subr.bf16.mxu0 0
    %265 = vmatpush1.bf16.msra.mxu0 0
    %266 = vmatprep.subr.bf16.mxu0 0
    %267 = vmatpush1.bf16.msra.mxu0 0
    %268 = vmatprep.subr.bf16.mxu0 0
    %269 = vmatpush1.bf16.msra.mxu0 0
    %270 = vmatprep.subr.bf16.mxu0 0
    %271 = vmatpush1.bf16.msra.mxu0 0
    %272 = vmatprep.subr.bf16.mxu0 0
    %273 = vmatpush1.bf16.msra.mxu0 0
    %274 = vmatprep.mubr.bf16.mxu0 0
    %275 = vmatmul.mubr.bf16.gmra.mrb[0].mxu0 %v170
    %v276 = vpop.f32.mrb[0].mxu0
    %v277 = vadd.f32 %v192, %v276
    %v278 = vpop.f32.mrb[0].mxu0
    %v279 = vpop.f32.mrb[0].mxu0
    %v280 = vpop.f32.mrb[0].mxu0
    %281 = vdwg.mxu0
    %v282 = vmax.f32 %v277, 0.0
    %v283 = vpack.c.bf16 %v282, %v282
    %v284 = vld [vmem:[%s5] sm:$0xf]
    %v285 = vld [vmem:[%s5 + $0x4] sm:$0xf]
    %v286 = vld [vmem:[%s5 + $0x8] sm:$0xf]
    %v287 = vld [vmem:[%s5 + $0xc] sm:$0xf]
    %v288 = vld [vmem:[%s5 + $0x10] sm:$0xf]
    %v289 = vld [vmem:[%s5 + $0x14] sm:$0xf]
    %v290 = vld [vmem:[%s5 + $0x18] sm:$0xf]
    %v291 = vld [vmem:[%s5 + $0x1c] sm:$0xf]
    %v292 = vld [vmem:[%s6] sm:$0x1]
    %v294 = vlaneseq
    %v295 = vshrl.u32 %v294, 7
    %v296 = vsub.s32 0, %v295
    %v297 = vrot.slane %v292, %v296
    %v307 = vunpack.c.l.b16 %v284
    %v308 = vunpack.c.l.b16 %v285
    %v309 = vunpack.c.l.b16 %v286
    %v310 = vunpack.c.l.b16 %v287
    %v311 = vunpack.c.l.b16 %v288
    %v312 = vunpack.c.l.b16 %v289
    %v313 = vunpack.c.l.b16 %v290
    %v314 = vunpack.c.l.b16 %v291
    %v315 = vpack.c.b16 %v308, %v307
    %v316 = vpack.c.b16 %v310, %v309
    %v317 = vpack.c.b16 %v312, %v311
    %v318 = vpack.c.b16 %v314, %v313
    %vm323 = vcmask 523264
    %v325 = vsel %vm323, %v283, 0
    %327 = vmatprep.subr.bf16.mxu0 0
    %328 = vmatpush1.bf16.msra.mxu0 %v315
    %329 = vmatprep.subr.bf16.mxu0 0
    %330 = vmatpush1.bf16.msra.mxu0 %v316
    %331 = vmatprep.subr.bf16.mxu0 0
    %332 = vmatpush1.bf16.msra.mxu0 %v317
    %333 = vmatprep.subr.bf16.mxu0 0
    %334 = vmatpush1.bf16.msra.mxu0 %v318
    %335 = vmatprep.subr.bf16.mxu0 0
    %336 = vmatpush1.bf16.msra.mxu0 0
    %337 = vmatprep.subr.bf16.mxu0 0
    %338 = vmatpush1.bf16.msra.mxu0 0
    %339 = vmatprep.subr.bf16.mxu0 0
    %340 = vmatpush1.bf16.msra.mxu0 0
    %341 = vmatprep.subr.bf16.mxu0 0
    %342 = vmatpush1.bf16.msra.mxu0 0
    %343 = vmatprep.subr.bf16.mxu0 0
    %344 = vmatpush1.bf16.msra.mxu0 0
    %345 = vmatprep.subr.bf16.mxu0 0
    %346 = vmatpush1.bf16.msra.mxu0 0
    %347 = vmatprep.subr.bf16.mxu0 0
    %348 = vmatpush1.bf16.msra.mxu0 0
    %349 = vmatprep.subr.bf16.mxu0 0
    %350 = vmatpush1.bf16.msra.mxu0 0
    %351 = vmatprep.subr.bf16.mxu0 0
    %352 = vmatpush1.bf16.msra.mxu0 0
    %353 = vmatprep.subr.bf16.mxu0 0
    %354 = vmatpush1.bf16.msra.mxu0 0
    %355 = vmatprep.subr.bf16.mxu0 0
    %356 = vmatpush1.bf16.msra.mxu0 0
    %357 = vmatprep.subr.bf16.mxu0 0
    %358 = vmatpush1.bf16.msra.mxu0 0
    %359 = vmatprep.mubr.bf16.mxu0 0
    %360 = vmatmul.mubr.bf16.gmra.mrb[0].mxu0 %v325
    %v361 = vpop.f32.mrb[0].mxu0
    %v362 = vadd.f32 %v297, %v361
    %v363 = vpop.f32.mrb[0].mxu0
    %v364 = vpop.f32.mrb[0].mxu0
    %v365 = vpop.f32.mrb[0].mxu0
    %366 = vdwg.mxu0
    %vm367 = vcmask 64512
    %368 = vst.msk [vmem:[#allocation2] sm:$0xff] %vm367, %v362
    // Predicated region
    $region30: #{music_sentiment_forward.1} parent=1 // pred_check
      _
    $region31: #{music_sentiment_forward.1} parent=1 // pred_check_branch
      %370 = sbr.rel (0) target = $region33
    $region32: #{music_sentiment_forward.1} parent=1 // pred_region
      %s372 = ssub.s32 128, 128
      %373 = vsyncadd [#allocation3], %s372
      %s375 = sshll.u32 [#allocation2], 4
      %s376 = int_to_ptr.vmem [resolvable:$true] %s375
      %378 = dma.vmem_to_hbm [thread:$0]  %s376, 128, %s7, [#allocation3]
    $region33: #{music_sentiment_forward.1} parent=1 // pred_fallthru
      _
    // Predicated region
    $region34: #{music_sentiment_forward.1} parent=1 // pred_check
      _
    $region35: #{music_sentiment_forward.1} parent=1 // pred_check_branch
      %380 = sbr.rel (0) target = $region37
    $region36: #{music_sentiment_forward.1} parent=1 // pred_region
      %381 = dma.done [#allocation3], 128
    $region37: #{music_sentiment_forward.1} parent=1 // pred_fallthru
      _
    %382 = vsyncpa [#allocation3], 1

</llo_original>
